<compile_context>
chip_gen: v5e
topology: v5e:2x2
jax: 0.10.0
libtpu: 0.0.40
codegen_flags: <defaults>
</compile_context>

<pallas_src>
import functools

import jax
import jax.numpy as jnp
from jax.experimental import pallas as pl
from jax.experimental.pallas import tpu as pltpu

GAMMA = -0.1
ZETA = 1.1

_LANE = 128


def _rectified_sigmoid_kernel(x_ref, o_ref, *, gamma, zeta):
    # Upcast to f32 (required on v5e; free on the mem-bound path everywhere).
    # sigmoid(x) == 0.5 * tanh(0.5 * x) + 0.5: a single EUP transcendental,
    # folded into the stretch so the body is one tanh + one FMA + clamp.
    x = x_ref[...].astype(jnp.float32)
    scale = 0.5 * (zeta - gamma)
    shift = 0.5 * (zeta - gamma) + gamma
    y = jnp.clip(scale * jnp.tanh(0.5 * x) + shift, 0.0, 1.0)
    o_ref[...] = y.astype(o_ref.dtype)


def _jnp_rectified_sigmoid(x, gamma, zeta):
    # Matches the kernel semantics: compute in f32, store back in input dtype.
    xf = x.astype(jnp.float32)
    y = jnp.clip(jax.nn.sigmoid(xf) * (zeta - gamma) + gamma, 0.0, 1.0)
    return y.astype(x.dtype)


def _device_kind():
    try:
        return jax.devices()[0].device_kind
    except Exception:  # pragma: no cover - defensive
        return ""


def _block_byte_budget(device_kind):
    """Per-generation per-block byte budget for the (double-buffered) tiles."""
    k = device_kind.lower()
    if "v7" in k:
        # ~3.2 TB/s HBM: bigger blocks amortize the ~0.35us per-step overhead.
        return 5 << 20
    if "v6" in k:
        return 4 << 20
    # v5e and unknown chips: already <7% per-step overhead at ~2 MiB; stay
    # conservative w.r.t. the 16 MiB scoped-VMEM default.
    return 2 << 20


def _choose_layout(n):
    """Pick (lane_w, rows) for a flat array of n elements (n % 128 == 0).

    Prefers a wide lane dimension (multiple of 128) that divides n exactly so
    the output stores are wide, unmasked vst's.
    """
    for cand in (4096, 2048, 1024, 512, 256, 128):
        if n % cand == 0:
            return cand, n // cand
    raise ValueError("n must be a multiple of 128")


def _choose_block_rows(rows, lane_w, itemsize, block_bytes, balance_two_cores):
    """Sublane block size: multiple of 8 (or full extent), sized by a byte
    budget, with an even >=4 grid-step count on two-TensorCore chips."""
    if rows <= 8:
        return rows  # full-extent block (always legal)

    target = max(8, (block_bytes // (lane_w * itemsize)) // 8 * 8)
    block_rows = min(target, rows)

    if block_rows == rows and rows >= 16:
        # A single grid step defeats double-buffering; split into >= 2 steps.
        block_rows = min(rows, max(8, (-(-rows // 2) + 7) // 8 * 8))

    if balance_two_cores and rows >= 32:
        # v7x: the "parallel" grid axis shards across 2 TensorCores. Prefer the
        # largest multiple-of-8 block (within the budget) giving an even, >= 4
        # step count so the cores split evenly and each keeps pipelining alive.
        cand = max(8, min(block_rows, rows) // 8 * 8)
        for _ in range(1024):
            if cand < 8:
                break
            steps = -(-rows // cand)
            if steps >= 4 and steps % 2 == 0:
                return cand
            cand -= 8

    return block_rows


def rectified_sigmoid(x, gamma=GAMMA, zeta=ZETA, *, min_pallas_elements=None):
    orig_shape = x.shape
    orig_dtype = x.dtype
    n = x.size

    if n == 0:
        return x

    device_kind = _device_kind()
    block_bytes = _block_byte_budget(device_kind)
    itemsize = jnp.dtype(orig_dtype).itemsize
    if min_pallas_elements is None:
        # Below roughly one block, pallas_call launch + single-step DMA
        # serialization loses to XLA's own fused elementwise op.
        min_pallas_elements = block_bytes // itemsize

    if n < max(_LANE, min_pallas_elements):
        return _jnp_rectified_sigmoid(x, gamma, zeta)

    flat = x.reshape(-1)

    # Ragged tail (< 128 elements): run the kernel on the divisible prefix and
    # handle the tail in plain jnp instead of a pad + slice pass over HBM.
    # TODO(synk): the final concatenate is still one extra read+write pass on
    # the ragged path; a masked ragged last block would remove it entirely.
    n_main = (n // _LANE) * _LANE
    tail = None
    if n_main != n:
        tail = _jnp_rectified_sigmoid(flat[n_main:], gamma, zeta)
        flat = flat[:n_main]

    lane_w, rows = _choose_layout(n_main)
    slab = flat.reshape(rows, lane_w)

    block_rows = _choose_block_rows(
        rows, lane_w, itemsize, block_bytes,
        balance_two_cores=("v7" in device_kind.lower()))
    grid = (pl.cdiv(rows, block_rows),)

    # Explicit VMEM budget: in + out blocks double-buffered, plus headroom for
    # the f32 intermediates in the kernel body. Kept well under every
    # generation's physical VMEM (64 MiB/TC on v7x).
    block_elems = block_rows * lane_w
    working = 4 * block_elems * itemsize + 3 * block_elems * 4 + (2 << 20)
    vmem_limit = int(min(56 << 20, max(32 << 20, working)))

    kernel = functools.partial(
        _rectified_sigmoid_kernel, gamma=float(gamma), zeta=float(zeta))

    out = pl.pallas_call(
        kernel,
        out_shape=jax.ShapeDtypeStruct((rows, lane_w), orig_dtype),
        grid=grid,
        # Default 2-deep pipelining is the right choice for a pure stream;
        # deeper buffering would only steal VMEM from larger blocks.
        in_specs=[pl.BlockSpec((block_rows, lane_w), lambda i: (i, 0))],
        out_specs=pl.BlockSpec((block_rows, lane_w), lambda i: (i, 0)),
        compiler_params=pltpu.CompilerParams(
            dimension_semantics=("parallel",),
            vmem_limit_bytes=vmem_limit,
        ),
    )(slab)

    out_flat = out.reshape(-1)
    if tail is not None:
        out_flat = jnp.concatenate([out_flat, tail])
    return out_flat.reshape(orig_shape)


def _reference(x, gamma=GAMMA, zeta=ZETA):
    return jnp.clip(jax.nn.sigmoid(x) * (zeta - gamma) + gamma, 0.0, 1.0)


if __name__ == "__main__":
    key = jax.random.PRNGKey(0)
    k1, k2, k3 = jax.random.split(key, 3)

    # NCHW, matching the PyTorch convention.
    x = jax.random.normal(k1, (2, 4, 16, 16), dtype=jnp.float32) * 3.0

    # Force the Pallas path even for this small test tensor.
    y = jax.block_until_ready(rectified_sigmoid(x, min_pallas_elements=0))
    y_ref = _reference(x)
    assert y.shape == x.shape and y.dtype == x.dtype
    assert jnp.max(jnp.abs(y - y_ref)) < 1e-5

    # Auto path (small-input bail-out to plain jnp) must agree as well.
    y_auto = jax.block_until_ready(rectified_sigmoid(x))
    assert jnp.max(jnp.abs(y_auto - y_ref)) < 1e-5

    # Ragged element count (n % 128 != 0): prefix kernel + jnp tail + concat.
    xr = jax.random.normal(k2, (2, 3, 7, 5), dtype=jnp.float32) * 3.0
    yr = jax.block_until_ready(rectified_sigmoid(xr, min_pallas_elements=0))
    assert yr.shape == xr.shape
    assert jnp.max(jnp.abs(yr - _reference(xr))) < 1e-5

    # bf16 input: byte-budget block sizing, result stored back in bf16.
    xb = (jax.random.normal(k3, (2, 4, 16, 16), dtype=jnp.float32) * 3.0
          ).astype(jnp.bfloat16)
    yb = jax.block_until_ready(rectified_sigmoid(xb, min_pallas_elements=0))
    assert yb.dtype == jnp.bfloat16
    assert jnp.max(jnp.abs(yb.astype(jnp.float32)
                           - _reference(xb.astype(jnp.float32)))) < 5e-3

    print("KERNEL_OK")
</pallas_src>

<mosaic_0001>
module attributes {stable_mosaic.version = 11 : i64} {
  func.func @_rectified_sigmoid_kernel(%arg0: i32, %arg1: memref<1x2048xf32, #tpu.memory_space<vmem>>, %arg2: memref<1x2048xf32, #tpu.memory_space<vmem>>) attributes {dimension_semantics = [#tpu.dimension_semantics<parallel>], iteration_bounds = array<i64: 1>, scalar_prefetch = 0 : i64, scratch_operands = 0 : i64, tpu.core_type = #tpu.core_type<tc>, window_params = [{transform_indices = @transform_0, window_bounds = array<i64: 1, 2048>}, {transform_indices = @transform_1, window_bounds = array<i64: 1, 2048>}]} {
    %c0 = arith.constant 0 : index
    %c0_0 = arith.constant 0 : index
    %0 = vector.load %arg1[%c0, %c0_0] : memref<1x2048xf32, #tpu.memory_space<vmem>>, vector<1x2048xf32>
    %cst = arith.constant 5.000000e-01 : f32
    %1 = vector.broadcast %cst : f32 to vector<1x2048xf32>
    %2 = arith.mulf %1, %0 : vector<1x2048xf32>
    %3 = math.tanh %2 : vector<1x2048xf32>
    %cst_1 = arith.constant 6.000000e-01 : f32
    %4 = vector.broadcast %cst_1 : f32 to vector<1x2048xf32>
    %5 = arith.mulf %4, %3 : vector<1x2048xf32>
    %cst_2 = arith.constant 5.000000e-01 : f32
    %6 = vector.broadcast %cst_2 : f32 to vector<1x2048xf32>
    %7 = arith.addf %5, %6 : vector<1x2048xf32>
    %cst_3 = arith.constant 0.000000e+00 : f32
    %cst_4 = arith.constant 1.000000e+00 : f32
    %8 = vector.broadcast %cst_3 : f32 to vector<1x2048xf32>
    %9 = arith.maximumf %8, %7 : vector<1x2048xf32>
    %10 = vector.broadcast %cst_4 : f32 to vector<1x2048xf32>
    %11 = arith.minimumf %10, %9 : vector<1x2048xf32>
    %c0_5 = arith.constant 0 : index
    %c0_6 = arith.constant 0 : index
    %12 = vector.load %arg2[%c0_5, %c0_6] : memref<1x2048xf32, #tpu.memory_space<vmem>>, vector<1x2048xf32>
    tpu.vector_store %arg2[%c0_5, %c0_6], %11 {strides = array<i32>} : memref<1x2048xf32, #tpu.memory_space<vmem>>, vector<1x2048xf32>,
    return
  }
  func.func @transform_0(%arg0: i32) -> (i32, i32) {
    %c0_i32 = arith.constant 0 : i32
    %c0_i32_0 = arith.constant 0 : i32
    return %arg0, %c0_i32 : i32, i32
  }
  func.func @transform_1(%arg0: i32) -> (i32, i32) {
    %c0_i32 = arith.constant 0 : i32
    %c0_i32_0 = arith.constant 0 : i32
    return %arg0, %c0_i32 : i32, i32
  }
}

</mosaic_0001>

<llo_original>
// kernel: tpu_custom_call.1
$region0: #{tpu_custom_call.1}
  #allocation0 [shape = 'u32[]', space=smem, size = 0x4, offset = 0x4, fixed_abs, tag = 'smem constant byte address 0x4 - core index']
  #allocation1 [shape = 'u32[72,128]{1,0:T(1,128)}', space=vmem, size = 0x9000, scoped, tag = 'internal scratch']
  %s0 = inlined_call_operand.hbm [shape: f32[1,2048], index: 0, kind: input, shape index: {}]
  %s1 = inlined_call_operand.hbm [shape: f32[1,2048], index: 1, kind: output, shape index: {}]
  %s2 = sld [smem:[#allocation0]]
  $region18: #{tpu_custom_call.1} parent=0
    _
  %s4 = ssub.s32 1, %s2
  %s5 = scalar_select 0, %s4, %s2
  $region1: #{tpu_custom_call.1} parent=0
    #allocation2 [shape = 'u8[8192]{0}', space=vmem, size = 0x2000, scoped, tag = 'input window, operand 0, single buffered']
    #allocation3 [shape = 's32[1]{0}', space=sflag, size = 0x4, scoped, tag = 'scoped memory for tpu_custom_call.1']
    #allocation4 [shape = 's32[1]{0}', space=sflag, size = 0x4, scoped, tag = 'scoped memory for tpu_custom_call.1']
    #allocation5 [shape = 'u8[8192]{0}', space=vmem, size = 0x2000, scoped, tag = 'output window, operand 0, single buffered']
    %6 = vsyncpa [#allocation3], 0
    %7 = vsyncpa [#allocation4], 0
    // Predicated region
    $region2: #{tpu_custom_call.1} parent=1 // pred_check
      _
    $region3: #{tpu_custom_call.1} parent=1 // pred_check_branch
      %9 = sbr.rel (0) target = $region5
    $region4: #{tpu_custom_call.1} parent=1 // pred_region
      %11 = vsyncadd [#allocation3], 0
      %s13 = sshll.u32 %s0, 4
      %s14 = int_to_ptr.hbm [resolvable:$true] %s13
      %s15 = sshll.u32 [#allocation2], 4
      %s16 = int_to_ptr.vmem [resolvable:$true] %s15
      %18 = dma.hbm_to_vmem [thread:$0]  %s14, 256, %s16, [#allocation3]
    $region5: #{tpu_custom_call.1} parent=1 // pred_fallthru
      _
    // Predicated region
    $region6: #{tpu_custom_call.1} parent=1 // pred_check
      _
    $region7: #{tpu_custom_call.1} parent=1 // pred_check_branch
      %20 = sbr.rel (0) target = $region9
    $region8: #{tpu_custom_call.1} parent=1 // pred_region
      %22 = dma.done [#allocation3], 256
    $region9: #{tpu_custom_call.1} parent=1 // pred_fallthru
      _
    %v23 = vld [vmem:[#allocation2] sm:$0xff]
    %v24 = vld [vmem:[#allocation2 + $0x8] sm:$0xff]
    %v25 = vmul.f32 %v23, 0.5
    %v26 = vmul.f32 %v24, 0.5
    %v27 = vtanh.pop %v25
    %v28 = vtanh.pop %v26
    %v29 = vmul.f32 %v27, 0.6
    %v30 = vmul.f32 %v28, 0.6
    %v31 = vadd.f32 %v29, 0.5
    %v32 = vadd.f32 %v30, 0.5
    %v33 = vmax.f32 %v31, 0.0
    %v34 = vmax.f32 %v32, 0.0
    %v35 = vmin.f32 %v33, 1.0
    %v36 = vmin.f32 %v34, 1.0
    %37 = vst [vmem:[#allocation5] sm:$0xff] %v35
    %38 = vst [vmem:[#allocation5 + $0x8] sm:$0xff] %v36
    // Predicated region
    $region10: #{tpu_custom_call.1} parent=1 // pred_check
      _
    $region11: #{tpu_custom_call.1} parent=1 // pred_check_branch
      %40 = sbr.rel (0) target = $region13
    $region12: #{tpu_custom_call.1} parent=1 // pred_region
      %42 = vsyncadd [#allocation4], 0
      %s44 = sshll.u32 [#allocation5], 4
      %s45 = int_to_ptr.vmem [resolvable:$true] %s44
      %s46 = sshll.u32 %s1, 4
      %s47 = int_to_ptr.hbm [resolvable:$true] %s46
      %49 = dma.vmem_to_hbm [thread:$0]  %s45, 256, %s47, [#allocation4]
    $region13: #{tpu_custom_call.1} parent=1 // pred_fallthru
      _
    // Predicated region
    $region14: #{tpu_custom_call.1} parent=1 // pred_check
      _
    $region15: #{tpu_custom_call.1} parent=1 // pred_check_branch
      %51 = sbr.rel (0) target = $region17
    $region16: #{tpu_custom_call.1} parent=1 // pred_region
      %53 = dma.done [#allocation4], 256
    $region17: #{tpu_custom_call.1} parent=1 // pred_fallthru
      _
    %54 = vsyncpa [#allocation3], 1
    %55 = vsyncpa [#allocation4], 1

</llo_original>
